<compile_context>
chip_gen: v7x
topology: tpu7x:2x2x1
jax: 0.10.0
libtpu: 0.0.40
codegen_flags: <defaults>
</compile_context>

<pallas_src>
import functools

import numpy as np
import jax
import jax.numpy as jnp
from jax import lax
from jax.experimental import pallas as pl
from jax.experimental.pallas import tpu as pltpu


def _seg_max_kernel(seg_ids_ref, blk_ids_ref, starts_ref, lens_ref,
                    x_ref, o_ref, *, t_frames):
    # grid = (nc_tiles, total_frame_blocks); axis 1 walks every (segment, block)
    # pair back-to-back -> no padded steps for skewed seqL.
    t = pl.program_id(1)
    i = seg_ids_ref[t]                      # segment index
    blk = blk_ids_ref[t]                    # global (aligned) frame-block index
    start = starts_ref[i]
    end = start + lens_ref[i]
    frame0 = blk * t_frames

    # Aligned blocks: only the segment's first block satisfies frame0 <= start.
    is_first = frame0 <= start
    # Interior blocks lie fully inside the segment -> no ragged-edge mask needed.
    interior = (frame0 >= start) & (frame0 + t_frames <= end)

    def _update(blk_max):
        # Initialize from the segment's first block (no -inf fill pass), then
        # accumulate with a vreg-vs-vreg max.
        @pl.when(is_first)
        def _():
            o_ref[...] = blk_max[None]

        @pl.when(jnp.logical_not(is_first))
        def _():
            o_ref[...] = jnp.maximum(o_ref[...], blk_max[None])

    @pl.when(interior)
    def _():
        # Hot path: plain unmasked max over the frame (sublane) axis.
        _update(jnp.max(x_ref[...], axis=1))

    @pl.when(jnp.logical_not(interior))
    def _():
        # Ragged first/last block of a segment (and the array tail): mask with a
        # tiny (T, 1) iota and let the select broadcast over lanes/channels.
        x = x_ref[...]
        if jnp.issubdtype(x_ref.dtype, jnp.floating):
            fill = jnp.array(-jnp.inf, dtype=x_ref.dtype)
        else:
            fill = jnp.array(jnp.iinfo(x_ref.dtype).min, dtype=x_ref.dtype)
        g = frame0 + lax.broadcasted_iota(jnp.int32, (t_frames, 1), 0)
        valid = (g >= start) & (g < end)                     # (T, 1)
        _update(jnp.max(jnp.where(valid[None], x, fill), axis=1))


def _vmem_capacity_bytes(default=64 << 20):
    """Physical VMEM of the local chip (128 MiB v5e/v6e, 64 MiB v7x)."""
    try:
        info = pltpu.get_tpu_info()
    except Exception:
        return default
    for attr in ("vmem_capacity_bytes", "vmem_bytes", "vmem_size_bytes"):
        v = getattr(info, attr, None)
        try:
            v = int(v)
        except (TypeError, ValueError):
            continue
        if v > 0:
            return v
    return default


def _round_down_mult(x, m):
    return (x // m) * m


def _pick_c_tile(nc, per_c_bytes, budget, want_tiles=2):
    """Channel tile: a multiple of 8 (ragged tail handled by a cdiv grid with
    masked write-back) or the full dim.  Largest tile whose input block fits
    `budget`, optionally capped so there are >= want_tiles channel blocks
    (keeps the 2nd TensorCore busy on v7x; near-free on single-TC chips)."""
    cap = max(1, int(budget // max(1, per_c_bytes)))
    if want_tiles > 1 and nc >= 8 * want_tiles:
        cap = min(cap, nc // want_tiles)
    if nc <= cap:
        return nc
    c_tile = _round_down_mult(min(cap, nc), 8)
    if c_tile < 8:
        return min(nc, 8)                 # smallest legal tile; budget is tiny
    # Prefer an exact divisor of nc, but only if it does not add tiles.
    n_tiles_ragged = -(-nc // c_tile)
    for d in range(c_tile, 7, -8):
        if nc // d > n_tiles_ragged:
            break
        if nc % d == 0:
            return d
    return c_tile


def pack_sequence_max_pool(seqs, seqL, dim=2, block_frames=None):
    """JAX/Pallas equivalent of PackSequenceWrapper(torch.max)(seqs, seqL, dim=2)[0].

    seqs : [n, c, s, h, w] array
    seqL : None, or a (1, k) host-side array of segment lengths summing to s
           (mirrors the PyTorch module which pulls seqL to host).
    Returns [k*n, c, h, w] (k=1 when seqL is None).
    """
    assert dim == 2, "PackSequenceWrapper kernel implemented for dim=2 (sequence axis)"
    n, c, s, h, w = seqs.shape

    if seqL is None:
        seg_lens = np.array([s], dtype=np.int64)
    else:
        seg_lens = np.asarray(np.asarray(seqL)[0], dtype=np.int64).reshape(-1)
    assert int(seg_lens.sum()) == s, "segment lengths must sum to the sequence length"
    assert np.all(seg_lens > 0), "zero-length segments are not supported"

    k = int(seg_lens.shape[0])
    starts = np.concatenate([[0], np.cumsum(seg_lens)[:-1]]).astype(np.int64)
    ends = starts + seg_lens

    nc, hw = n * c, h * w
    # Free reshape: (n, c) and (h, w) are adjacent contiguous dims -> no transpose,
    # no pad; the kernel reads the input exactly once from HBM.
    x = seqs.reshape(nc, s, hw)
    itemsize = jnp.dtype(seqs.dtype).itemsize

    # ---- generation-aware tile sizing -------------------------------------
    vmem_cap = _vmem_capacity_bytes()                # 128 MiB v5e/v6e, 64 MiB v7x
    in_block_budget = max(2 << 20, vmem_cap // 8)    # ~16 MiB v6e / ~8 MiB v7x

    sub = max(8, 32 // itemsize)                     # full-sublane packing unit
    t_cap = 8 * sub                                  # 64 f32 / 128 bf16 / 256 int8
    t_frames = s if s <= t_cap else t_cap            # full frame dim is always legal
    if block_frames is not None:                     # test / tuning override
        t_frames = min(s, max(sub, _round_down_mult(block_frames, sub)))
    # Shrink T (in sublane-unit steps) if even 8 channel rows would overflow budget.
    min_rows = min(nc, 8)
    while t_frames > sub and min_rows * t_frames * hw * itemsize > in_block_budget:
        t_frames = max(sub, _round_down_mult(t_frames - 1, sub))

    c_tile = _pick_c_tile(nc, t_frames * hw * itemsize, in_block_budget, want_tiles=2)
    nc_tiles = -(-nc // c_tile)

    # ---- flattened (segment, frame-block) schedule (scalar-prefetched) -----
    first_blk = starts // t_frames
    last_blk = (ends - 1) // t_frames
    nblk = (last_blk - first_blk + 1).astype(np.int64)
    total_blocks = int(nblk.sum())
    seg_ids = np.repeat(np.arange(k, dtype=np.int32), nblk)
    blk_ids = np.concatenate([np.arange(f, l + 1, dtype=np.int32)
                              for f, l in zip(first_blk, last_blk)])

    seg_ids_j = jnp.asarray(seg_ids, dtype=jnp.int32)
    blk_ids_j = jnp.asarray(blk_ids, dtype=jnp.int32)
    starts_j = jnp.asarray(starts, dtype=jnp.int32)
    lens_j = jnp.asarray(seg_lens, dtype=jnp.int32)

    def in_index_map(cb, t, seg_ids_ref, blk_ids_ref, starts_ref, lens_ref):
        # Consecutive steps sharing a frame block (segment boundary inside one
        # block) keep the same index -> Pallas skips the re-DMA.
        return (cb, blk_ids_ref[t], 0)

    def out_index_map(cb, t, seg_ids_ref, blk_ids_ref, starts_ref, lens_ref):
        return (seg_ids_ref[t], cb, 0)

    grid_spec = pltpu.PrefetchScalarGridSpec(
        num_scalar_prefetch=4,
        grid=(nc_tiles, total_blocks),
        # NOTE: pipeline_mode=pl.Buffered(3) on the input spec is a possible low
        # single-digit % win on v7x if VMEM headroom allows; default 2 kept here.
        in_specs=[pl.BlockSpec((c_tile, t_frames, hw), in_index_map)],
        out_specs=pl.BlockSpec((1, c_tile, hw), out_index_map),
    )

    in_block_bytes = c_tile * t_frames * hw * itemsize
    out_block_bytes = c_tile * hw * itemsize
    vmem_limit = 2 * in_block_bytes + 2 * out_block_bytes + (2 << 20)
    vmem_limit = int(min(max(vmem_limit, 16 << 20), vmem_cap * 3 // 4))

    out = pl.pallas_call(
        functools.partial(_seg_max_kernel, t_frames=t_frames),
        grid_spec=grid_spec,
        out_shape=jax.ShapeDtypeStruct((k, nc, hw), seqs.dtype),
        compiler_params=pltpu.CompilerParams(
            dimension_semantics=("parallel", "arbitrary"),
            vmem_limit_bytes=vmem_limit),
        cost_estimate=pl.CostEstimate(
            flops=int(s * nc * hw),
            transcendentals=0,
            bytes_accessed=int((s + k) * nc * hw * itemsize)),
    )(seg_ids_j, blk_ids_j, starts_j, lens_j, x)

    # [k, n*c, h*w] -> [k*n, c, h, w]  (adjacent-dim splits/merges: free)
    return out.reshape(k, n, c, h, w).reshape(k * n, c, h, w)


if __name__ == "__main__":
    key = jax.random.PRNGKey(0)
    k1, k2, k3 = jax.random.split(key, 3)

    # Case 1: n=2, c=4, s=16, h=8, w=8 with three ragged segments.
    n, c, s, h, w = 2, 4, 16, 8, 8
    seqs = jax.random.normal(k1, (n, c, s, h, w), dtype=jnp.float32)
    seqL = np.array([[4, 6, 6]], dtype=np.int32)
    out = jax.block_until_ready(pack_sequence_max_pool(seqs, seqL, dim=2))
    seg_lens = np.asarray(seqL[0])
    starts = np.concatenate([[0], np.cumsum(seg_lens)[:-1]])
    ref = jnp.concatenate(
        [jnp.max(seqs[:, :, st:st + ln], axis=2) for st, ln in zip(starts, seg_lens)],
        axis=0)
    assert out.shape == ref.shape == (len(seg_lens) * n, c, h, w)
    np.testing.assert_allclose(np.asarray(out), np.asarray(ref), rtol=1e-6, atol=1e-6)

    # Case 2: seqL=None -> plain max over the sequence axis.
    out_none = jax.block_until_ready(pack_sequence_max_pool(seqs, None, dim=2))
    np.testing.assert_allclose(
        np.asarray(out_none), np.asarray(jnp.max(seqs, axis=2)), rtol=1e-6, atol=1e-6)

    # Case 3: sequence length not a multiple of the sublane unit (full-dim frame block).
    n2, c2, s2, h2, w2 = 1, 3, 13, 8, 8
    seqs2 = jax.random.normal(k2, (n2, c2, s2, h2, w2), dtype=jnp.float32)
    seqL2 = np.array([[5, 8]], dtype=np.int32)
    out2 = jax.block_until_ready(pack_sequence_max_pool(seqs2, seqL2, dim=2))
    ref2 = jnp.concatenate([jnp.max(seqs2[:, :, 0:5], axis=2),
                            jnp.max(seqs2[:, :, 5:13], axis=2)], axis=0)
    np.testing.assert_allclose(np.asarray(out2), np.asarray(ref2), rtol=1e-6, atol=1e-6)

    # Case 4: multi-block segments (exercises init + accumulate, interior fast path,
    # shared boundary block, and the partial array-tail block).  block_frames=8
    # forces several frame blocks per segment at this tiny shape.
    n3, c3, s3, h3, w3 = 2, 4, 20, 8, 8
    seqs3 = jax.random.normal(k3, (n3, c3, s3, h3, w3), dtype=jnp.float32)
    seqL3 = np.array([[9, 11]], dtype=np.int32)
    out3 = jax.block_until_ready(
        pack_sequence_max_pool(seqs3, seqL3, dim=2, block_frames=8))
    ref3 = jnp.concatenate([jnp.max(seqs3[:, :, 0:9], axis=2),
                            jnp.max(seqs3[:, :, 9:20], axis=2)], axis=0)
    np.testing.assert_allclose(np.asarray(out3), np.asarray(ref3), rtol=1e-6, atol=1e-6)

    print("KERNEL_OK")
</pallas_src>

<mosaic_0001>
module attributes {stable_mosaic.version = 11 : i64} {
  func.func @_seg_max_kernel(%arg0: i32, %arg1: i32, %arg2: memref<3xi32, #tpu.memory_space<smem>>, %arg3: memref<3xi32, #tpu.memory_space<smem>>, %arg4: memref<3xi32, #tpu.memory_space<smem>>, %arg5: memref<3xi32, #tpu.memory_space<smem>>, %arg6: memref<8x16x64xf32, #tpu.memory_space<vmem>>, %arg7: memref<1x8x64xf32, #tpu.memory_space<vmem>>) attributes {dimension_semantics = [#tpu.dimension_semantics<parallel>, #tpu.dimension_semantics<arbitrary>], iteration_bounds = array<i64: 1, 3>, scalar_prefetch = 4 : i64, scratch_operands = 0 : i64, tpu.core_type = #tpu.core_type<tc>, window_params = [{transform_indices = @transform_0, window_bounds = array<i64: 8, 16, 64>}, {transform_indices = @transform_1, window_bounds = array<i64: 1, 8, 64>}]} {
    %0 = arith.index_cast %arg1 : i32 to index
    %1 = memref.load %arg2[%0] : memref<3xi32, #tpu.memory_space<smem>>
    %2 = arith.index_cast %arg1 : i32 to index
    %3 = memref.load %arg3[%2] : memref<3xi32, #tpu.memory_space<smem>>
    %4 = arith.index_cast %1 : i32 to index
    %5 = memref.load %arg4[%4] : memref<3xi32, #tpu.memory_space<smem>>
    %6 = arith.index_cast %1 : i32 to index
    %7 = memref.load %arg5[%6] : memref<3xi32, #tpu.memory_space<smem>>
    %8 = arith.addi %5, %7 : i32
    %c16_i32 = arith.constant 16 : i32
    %9 = arith.muli %3, %c16_i32 : i32
    %10 = arith.cmpi sle, %9, %5 : i32
    %11 = arith.cmpi sge, %9, %5 : i32
    %c16_i32_0 = arith.constant 16 : i32
    %12 = arith.addi %9, %c16_i32_0 : i32
    %13 = arith.cmpi sle, %12, %8 : i32
    %14 = arith.andi %11, %13 : i1
    %15 = arith.extui %14 : i1 to i32
    %c0_i32 = arith.constant 0 : i32
    %16 = arith.cmpi ne, %15, %c0_i32 : i32
    scf.if %16 {
      %c0 = arith.constant 0 : index
      %c0_2 = arith.constant 0 : index
      %c0_3 = arith.constant 0 : index
      %20 = vector.load %arg6[%c0, %c0_2, %c0_3] : memref<8x16x64xf32, #tpu.memory_space<vmem>>, vector<8x16x64xf32>
      %cst = arith.constant dense<0xFF800000> : vector<8x64xf32>
      %21 = vector.multi_reduction <maximumf>, %20, %cst [1] : vector<8x16x64xf32> to vector<8x64xf32>
      %22 = arith.extui %10 : i1 to i32
      %c0_i32_4 = arith.constant 0 : i32
      %23 = arith.cmpi ne, %22, %c0_i32_4 : i32
      scf.if %23 {
        %27 = vector.shape_cast %21 : vector<8x64xf32> to vector<1x8x64xf32>
        %c0_7 = arith.constant 0 : index
        %c0_8 = arith.constant 0 : index
        %c0_9 = arith.constant 0 : index
        %28 = vector.load %arg7[%c0_7, %c0_8, %c0_9] : memref<1x8x64xf32, #tpu.memory_space<vmem>>, vector<1x8x64xf32>
        tpu.vector_store %arg7[%c0_7, %c0_8, %c0_9], %27 {strides = array<i32>} : memref<1x8x64xf32, #tpu.memory_space<vmem>>, vector<1x8x64xf32>,
      } else {
      }
      %true_5 = arith.constant true
      %24 = arith.xori %10, %true_5 : i1
      %25 = arith.extui %24 : i1 to i32
      %c0_i32_6 = arith.constant 0 : i32
      %26 = arith.cmpi ne, %25, %c0_i32_6 : i32
      scf.if %26 {
        %c0_7 = arith.constant 0 : index
        %c0_8 = arith.constant 0 : index
        %c0_9 = arith.constant 0 : index
        %27 = vector.load %arg7[%c0_7, %c0_8, %c0_9] : memref<1x8x64xf32, #tpu.memory_space<vmem>>, vector<1x8x64xf32>
        %28 = vector.shape_cast %21 : vector<8x64xf32> to vector<1x8x64xf32>
        %29 = arith.maximumf %27, %28 : vector<1x8x64xf32>
        %c0_10 = arith.constant 0 : index
        %c0_11 = arith.constant 0 : index
        %c0_12 = arith.constant 0 : index
        %30 = vector.load %arg7[%c0_10, %c0_11, %c0_12] : memref<1x8x64xf32, #tpu.memory_space<vmem>>, vector<1x8x64xf32>
        tpu.vector_store %arg7[%c0_10, %c0_11, %c0_12], %29 {strides = array<i32>} : memref<1x8x64xf32, #tpu.memory_space<vmem>>, vector<1x8x64xf32>,
      } else {
      }
    } else {
    }
    %true = arith.constant true
    %17 = arith.xori %14, %true : i1
    %18 = arith.extui %17 : i1 to i32
    %c0_i32_1 = arith.constant 0 : i32
    %19 = arith.cmpi ne, %18, %c0_i32_1 : i32
    scf.if %19 {
      %c0 = arith.constant 0 : index
      %c0_2 = arith.constant 0 : index
      %c0_3 = arith.constant 0 : index
      %20 = vector.load %arg6[%c0, %c0_2, %c0_3] : memref<8x16x64xf32, #tpu.memory_space<vmem>>, vector<8x16x64xf32>
      %21 = tpu.iota {dimensions = array<i32: 0>} : vector<16x1xi32>
      %22 = vector.broadcast %9 : i32 to vector<16x1xi32>
      %23 = arith.addi %22, %21 : vector<16x1xi32>
      %24 = vector.broadcast %5 : i32 to vector<16x1xi32>
      %25 = arith.cmpi sge, %23, %24 : vector<16x1xi32>
      %26 = vector.broadcast %8 : i32 to vector<16x1xi32>
      %27 = arith.cmpi slt, %23, %26 : vector<16x1xi32>
      %28 = arith.andi %25, %27 : vector<16x1xi1>
      %29 = vector.shape_cast %28 : vector<16x1xi1> to vector<1x16x1xi1>
      %cst = arith.constant 0xFF800000 : f32
      %30 = vector.shape_cast %29 : vector<1x16x1xi1> to vector<1x16x1xi1>
      %31 = vector.broadcast %30 : vector<1x16x1xi1> to vector<8x16x64xi1>
      %32 = vector.broadcast %cst : f32 to vector<8x16x64xf32>
      %33 = arith.select %31, %20, %32 : vector<8x16x64xi1>, vector<8x16x64xf32>
      %cst_4 = arith.constant dense<0xFF800000> : vector<8x64xf32>
      %34 = vector.multi_reduction <maximumf>, %33, %cst_4 [1] : vector<8x16x64xf32> to vector<8x64xf32>
      %35 = arith.extui %10 : i1 to i32
      %c0_i32_5 = arith.constant 0 : i32
      %36 = arith.cmpi ne, %35, %c0_i32_5 : i32
      scf.if %36 {
        %40 = vector.shape_cast %34 : vector<8x64xf32> to vector<1x8x64xf32>
        %c0_8 = arith.constant 0 : index
        %c0_9 = arith.constant 0 : index
        %c0_10 = arith.constant 0 : index
        %41 = vector.load %arg7[%c0_8, %c0_9, %c0_10] : memref<1x8x64xf32, #tpu.memory_space<vmem>>, vector<1x8x64xf32>
        tpu.vector_store %arg7[%c0_8, %c0_9, %c0_10], %40 {strides = array<i32>} : memref<1x8x64xf32, #tpu.memory_space<vmem>>, vector<1x8x64xf32>,
      } else {
      }
      %true_6 = arith.constant true
      %37 = arith.xori %10, %true_6 : i1
      %38 = arith.extui %37 : i1 to i32
      %c0_i32_7 = arith.constant 0 : i32
      %39 = arith.cmpi ne, %38, %c0_i32_7 : i32
      scf.if %39 {
        %c0_8 = arith.constant 0 : index
        %c0_9 = arith.constant 0 : index
        %c0_10 = arith.constant 0 : index
        %40 = vector.load %arg7[%c0_8, %c0_9, %c0_10] : memref<1x8x64xf32, #tpu.memory_space<vmem>>, vector<1x8x64xf32>
        %41 = vector.shape_cast %34 : vector<8x64xf32> to vector<1x8x64xf32>
        %42 = arith.maximumf %40, %41 : vector<1x8x64xf32>
        %c0_11 = arith.constant 0 : index
        %c0_12 = arith.constant 0 : index
        %c0_13 = arith.constant 0 : index
        %43 = vector.load %arg7[%c0_11, %c0_12, %c0_13] : memref<1x8x64xf32, #tpu.memory_space<vmem>>, vector<1x8x64xf32>
        tpu.vector_store %arg7[%c0_11, %c0_12, %c0_13], %42 {strides = array<i32>} : memref<1x8x64xf32, #tpu.memory_space<vmem>>, vector<1x8x64xf32>,
      } else {
      }
    } else {
    }
    return
  }
  func.func @transform_0(%arg0: i32, %arg1: i32, %arg2: memref<3xi32, #tpu.memory_space<smem>>, %arg3: memref<3xi32, #tpu.memory_space<smem>>, %arg4: memref<3xi32, #tpu.memory_space<smem>>, %arg5: memref<3xi32, #tpu.memory_space<smem>>) -> (i32, i32, i32) {
    %0 = arith.index_cast %arg1 : i32 to index
    %1 = memref.load %arg3[%0] : memref<3xi32, #tpu.memory_space<smem>>
    %c0_i32 = arith.constant 0 : i32
    %c0_i32_0 = arith.constant 0 : i32
    return %arg0, %1, %c0_i32 : i32, i32, i32
  }
  func.func @transform_1(%arg0: i32, %arg1: i32, %arg2: memref<3xi32, #tpu.memory_space<smem>>, %arg3: memref<3xi32, #tpu.memory_space<smem>>, %arg4: memref<3xi32, #tpu.memory_space<smem>>, %arg5: memref<3xi32, #tpu.memory_space<smem>>) -> (i32, i32, i32) {
    %0 = arith.index_cast %arg1 : i32 to index
    %1 = memref.load %arg2[%0] : memref<3xi32, #tpu.memory_space<smem>>
    %c0_i32 = arith.constant 0 : i32
    %c0_i32_0 = arith.constant 0 : i32
    return %1, %arg0, %c0_i32 : i32, i32, i32
  }
}

</mosaic_0001>

<llo_original>
// kernel: tpu_custom_call.1
$region0: #{tpu_custom_call.1}
  #allocation0 [shape = 'u32[]', space=smem, size = 0x4, offset = 0x4, fixed_abs, tag = 'smem constant byte address 0x4 - core index']
  #allocation1 [shape = 'u32[144,128]{1,0:T(1,128)}', space=vmem, size = 0x12000, scoped, tag = 'internal scratch']
  #allocation2 [shape = 's32[1]{0}', space=sflag, size = 0x4, scoped, tag = 'scoped memory for tpu_custom_call.1']
  #allocation3 [shape = 'u8[512]{0}', space=smem, size = 0x200, scoped, tag = 'prefetched SMEM operand 0']
  #allocation4 [shape = 'u8[512]{0}', space=smem, size = 0x200, scoped, tag = 'prefetched SMEM operand 1']
  #allocation5 [shape = 'u8[512]{0}', space=smem, size = 0x200, scoped, tag = 'prefetched SMEM operand 2']
  #allocation6 [shape = 'u8[512]{0}', space=smem, size = 0x200, scoped, tag = 'prefetched SMEM operand 3']
  %s0 = inlined_call_operand.hbm [shape: s32[3], index: 0, kind: input, shape index: {}]
  %s1 = inlined_call_operand.vmem [shape: s32[3], index: 1, kind: input, shape index: {}]
  %s2 = inlined_call_operand.vmem [shape: s32[3], index: 2, kind: input, shape index: {}]
  %s3 = inlined_call_operand.vmem [shape: s32[3], index: 3, kind: input, shape index: {}]
  %s4 = inlined_call_operand.hbm [shape: f32[8,16,64], index: 4, kind: input, shape index: {}]
  %s5 = inlined_call_operand.hbm [shape: f32[3,8,64], index: 5, kind: output, shape index: {}]
  %s6 = sld [smem:[#allocation0]]
  $region65: #{tpu_custom_call.1} parent=0
    _
  %s8 = ssub.s32 1, %s6
  %s9 = scalar_select 0, %s8, %s6
  %11 = dma.hbm_to_smem %s0, 16, [#allocation3], [#allocation2]
  %s12 = sshll.u32 %s1, 4
  %s13 = int_to_ptr.vmem [resolvable:$true] %s12
  %15 = dma.vmem_to_smem %s13, 16, [#allocation4], [#allocation2]
  %s16 = sshll.u32 %s2, 4
  %s17 = int_to_ptr.vmem [resolvable:$true] %s16
  %19 = dma.vmem_to_smem %s17, 16, [#allocation5], [#allocation2]
  %s20 = sshll.u32 %s3, 4
  %s21 = int_to_ptr.vmem [resolvable:$true] %s20
  %23 = dma.vmem_to_smem %s21, 16, [#allocation6], [#allocation2]
  %24 = dma.done [#allocation2], 64
  %25 = sfence
  $region1: #{tpu_custom_call.1} parent=0
    #allocation7 [shape = 'u8[131072]{0}', space=vmem, size = 0x20000, scoped, tag = 'input window, operand 4']
    #allocation8 [shape = 's32[2]{0}', space=sflag, size = 0x8, scoped, tag = 'scoped memory for tpu_custom_call.1']
    #allocation9 [shape = 's32[2]{0}', space=sflag, size = 0x8, scoped, tag = 'scoped memory for tpu_custom_call.1']
    #allocation10 [shape = 'u8[8192]{0}', space=vmem, size = 0x2000, scoped, tag = 'output window, operand 0']
    %26 = vsyncpa [#allocation8], 0
    %s27 = scalar_lea.sflag [#allocation8], 1
    %28 = vsyncpa %s27, 0
    %29 = vsyncpa [#allocation9], 0
    %s30 = scalar_lea.sflag [#allocation9], 1
    %31 = vsyncpa %s30, 0
    loop: start=0, step=1, limit=5
    $region2: #{tpu_custom_call.1} parent=1 // loop_pre_header
      _
    $region3: #{tpu_custom_call.1} parent=1 // loop_header
      %s33 = sphi 0, %s37
      %p34 = scmp.ge.s32.totalorder %s33, 5
      %s40 = sphi 0, %s52
      %s41 = sphi 0, %s48
      %s42 = sphi 0, %s40
      %s43 = sphi 0, %s41
      %s44 = sphi 0, %s42
      %s45 = sphi 0, %s43
      %s59 = sphi 0, %s61
      %s62 = sphi 0, %s59
      %s63 = sphi 0, %s62
      %s79 = sphi 0, %s63
      %s89 = sphi 0, %s91
      %s92 = sphi 0, %s89
      %s93 = sphi 0, %s92
      %s109 = sphi 0, %s93
    $region4: #{tpu_custom_call.1} parent=1 // loop_header_branch
      %36 = sbr.rel (%p34) target = $region8
    $region5: #{tpu_custom_call.1} parent=1 // loop_body
      %s38 = ssub.s32 %s33, 1
      %s39 = ssub.s32 %s33, 2
      %s46 = sadd.s32 1, %s41
      %p47 = scmp.ge.s32.totalorder %s46, 3
      %s48 = scalar_select %p47, 0, %s46
      %s49 = sadd.s32 1, %s40
      %s50 = scalar_select %p47, %s49, %s40
      %p51 = scmp.ge.s32.totalorder %s50, 1
      %s52 = scalar_select %p51, 0, %s50
      %s53 = sld [smem:[#allocation4 + %s41]]
      %s54 = sld [smem:[#allocation4 + %s48]]
      %s55 = ssub.s32 %s40, %s52
      %s56 = ssub.s32 %s53, %s54
      %s57 = sor.u32 %s55, %s56
      %p58 = scmp.eq.s32.totalorder %s57, 0
      %s60 = sadd.s32 %s59, 1
      %s61 = scalar_select %p58, %s59, %s60
      %p64 = pneg %p58
      %p65 = scmp.eq.s32.totalorder %s33, 2
      %p66 = por %p64, %p65
      %p67 = scmp.ne.s32.totalorder %s59, %s62
      %p68 = scmp.eq.s32.totalorder %s33, 0
      %p69 = por %p67, %p68
      %p70 = scmp.ne.s32.totalorder %s59, %s62
      %p71 = scmp.eq.s32.totalorder %s38, 2
      %p72 = por %p70, %p71
      %p73 = scmp.ne.s32.totalorder %s62, %s63
      %p74 = scmp.eq.s32.totalorder %s38, 0
      %p75 = por %p73, %p74
      %p76 = scmp.ne.s32.totalorder %s62, %s63
      %p77 = scmp.eq.s32.totalorder %s39, 2
      %p78 = por %p76, %p77
      %p80 = scmp.ne.s32.totalorder %s63, %s79
      %p81 = scmp.eq.s32.totalorder %s39, 0
      %p82 = por %p80, %p81
      %s83 = sld [smem:[#allocation3 + %s41]]
      %s84 = sld [smem:[#allocation3 + %s48]]
      %s85 = ssub.s32 %s83, %s84
      %s86 = ssub.s32 %s40, %s52
      %s87 = sor.u32 %s85, %s86
      %p88 = scmp.eq.s32.totalorder %s87, 0
      %s90 = sadd.s32 %s89, 1
      %s91 = scalar_select %p88, %s89, %s90
      %p94 = pneg %p88
      %p95 = scmp.eq.s32.totalorder %s33, 2
      %p96 = por %p94, %p95
      %p97 = scmp.ne.s32.totalorder %s89, %s92
      %p98 = scmp.eq.s32.totalorder %s33, 0
      %p99 = por %p97, %p98
      %p100 = scmp.ne.s32.totalorder %s89, %s92
      %p101 = scmp.eq.s32.totalorder %s38, 2
      %p102 = por %p100, %p101
      %p103 = scmp.ne.s32.totalorder %s92, %s93
      %p104 = scmp.eq.s32.totalorder %s38, 0
      %p105 = por %p103, %p104
      %p106 = scmp.ne.s32.totalorder %s92, %s93
      %p107 = scmp.eq.s32.totalorder %s39, 2
      %p108 = por %p106, %p107
      %p110 = scmp.ne.s32.totalorder %s93, %s109
      %p111 = scmp.eq.s32.totalorder %s39, 0
      %p112 = por %p110, %p111
      %p113 = scmp.le.s32.totalorder 1, %s33
      %p114 = scmp.lt.s32.totalorder %s33, 4
      %p115 = pnand %p113, %p114
      %p116 = pneg %p115
      // Predicated region
      $region9: #{tpu_custom_call.1} parent=5 // pred_check
        _
      $region10: #{tpu_custom_call.1} parent=5 // pred_check_branch
        %118 = sbr.rel (%p115) target = $region12
      $region11: #{tpu_custom_call.1} parent=5 // pred_region
        %s119 = ssub.s32 %s33, 1
      $region12: #{tpu_custom_call.1} parent=5 // pred_fallthru
        _
      %p120 = scmp.lt.s32.totalorder %s33, 3
      // Predicated region
      $region13: #{tpu_custom_call.1} parent=5 // pred_check
        %p121 = pneg %p120
      $region14: #{tpu_custom_call.1} parent=5 // pred_check_branch
        %123 = sbr.rel (%p121) target = $region16
      $region15: #{tpu_custom_call.1} parent=5 // pred_region
        // Predicated region
        $region17: #{tpu_custom_call.1} parent=15 // pred_check
          %p124 = pneg %p69
        $region18: #{tpu_custom_call.1} parent=15 // pred_check_branch
          %126 = sbr.rel (%p124) target = $region20
        $region19: #{tpu_custom_call.1} parent=15 // pred_region
          %s127 = sand.u32 %s59, 1
          %s128 = scalar_lea.sflag [#allocation8], %s127
          %s129 = sand.u32 %s59, 1
          %s130 = smul.addr %s129, 128
          %s131 = scalar_lea.vmem [#allocation7], %s130
          %s132 = sld [smem:[#allocation4 + %s41]]
          %s133 = smul.u32 8, %s40
          %s134 = smul.u32 2, %s132
          %s136 = ssub.s32 2048, 2048
          %137 = vsyncadd %s128, %s136
          %s138 = smul.addr %s133, 2
          %s139 = sadd.s32 %s134, %s138
          %s140 = smul.addr %s139, 128
          %s141 = scalar_lea.hbm %s4, %s140
          %s142 = sshll.u32 %s131, 4
          %s143 = int_to_ptr.vmem [resolvable:$true] %s142
          %148 = dma.hbm_to_vmem [thread:$0]  %s141, 2048, %s143, %s128, 128, 128, 8
        $region20: #{tpu_custom_call.1} parent=15 // pred_fallthru
          _
      $region16: #{tpu_custom_call.1} parent=5 // pred_fallthru
        _
      %p149 = scmp.le.s32.totalorder 1, %s33
      %p150 = scmp.lt.s32.totalorder %s33, 4
      %p151 = pnand %p149, %p150
      %p152 = pneg %p151
      // Predicated region
      $region21: #{tpu_custom_call.1} parent=5 // pred_check
        _
      $region22: #{tpu_custom_call.1} parent=5 // pred_check_branch
        %154 = sbr.rel (%p151) target = $region24
      $region23: #{tpu_custom_call.1} parent=5 // pred_region
        %s155 = ssub.s32 %s33, 1
        %s156 = sand.u32 %s62, 1
        %s157 = scalar_lea.sflag [#allocation8], %s156
        %s158 = sand.u32 %s62, 1
        %s159 = smul.addr %s158, 128
        %s160 = scalar_lea.vmem [#allocation7], %s159
        // Predicated region
        $region25: #{tpu_custom_call.1} parent=23 // pred_check
          %p161 = pneg %p75
        $region26: #{tpu_custom_call.1} parent=23 // pred_check_branch
          %163 = sbr.rel (%p161) target = $region28
        $region27: #{tpu_custom_call.1} parent=23 // pred_region
          %164 = dma.done %s157, 2048
        $region28: #{tpu_custom_call.1} parent=23 // pred_fallthru
          _
        %s165 = sand.u32 %s62, 1
        %s166 = scalar_lea.sflag [#allocation8], %s165
        %s167 = sand.u32 %s62, 1
        %s168 = smul.addr %s167, 128
        %s169 = scalar_lea.vmem [#allocation7], %s168
        %p170 = pneg %p75
        %p171 = pneg %p72
        %p172 = pneg %p105
        %p173 = pneg %p102
        %s174 = sand.u32 %s92, 1
        %s175 = scalar_lea.sflag [#allocation9], %s174
        %s176 = sand.u32 %s92, 1
        %s177 = smul.addr %s176, 8
        %s178 = scalar_lea.vmem [#allocation10], %s177
        %s179 = sld [smem:[#allocation4 + %s43]]
        %s180 = smul.u32 8, %s42
        %s181 = smul.u32 2, %s179
        %s182 = sld [smem:[#allocation3 + %s43]]
        %s183 = sld [smem:[#allocation3 + %s43]]
        %s184 = sld [smem:[#allocation4 + %s43]]
        %s185 = sld [smem:[#allocation5 + %s183]]
        %s186 = sld [smem:[#allocation6 + %s183]]
        %s187 = sadd.s32 %s185, %s186
        %s188 = smul.u32 %s184, 16
        %p189 = scmp.le.s32.totalorder %s188, %s185
        %p190 = scmp.ge.s32.totalorder %s188, %s185
        %s191 = sadd.s32 %s188, 16
        %p192 = scmp.le.s32.totalorder %s191, %s187
        %p193 = pnand %p190, %p192
        %p194 = pneg %p193
        // Predicated region
        $region29: #{tpu_custom_call.1} parent=23 // pred_check
          _
        $region30: #{tpu_custom_call.1} parent=23 // pred_check_branch
          %196 = sbr.rel (%p193) target = $region32
        $region31: #{tpu_custom_call.1} parent=23 // pred_region
          %v197 = vld [vmem:[%s160] sm:$0xff]
          %v198 = vld [vmem:[%s160 + $0x8] sm:$0xff]
          %v199 = vld [vmem:[%s160 + $0x10] sm:$0xff]
          %v200 = vld [vmem:[%s160 + $0x18] sm:$0xff]
          %v201 = vld [vmem:[%s160 + $0x20] sm:$0xff]
          %v202 = vld [vmem:[%s160 + $0x28] sm:$0xff]
          %v203 = vld [vmem:[%s160 + $0x30] sm:$0xff]
          %v204 = vld [vmem:[%s160 + $0x38] sm:$0xff]
          %v205 = vld [vmem:[%s160 + $0x40] sm:$0xff]
          %v206 = vld [vmem:[%s160 + $0x48] sm:$0xff]
          %v207 = vld [vmem:[%s160 + $0x50] sm:$0xff]
          %v208 = vld [vmem:[%s160 + $0x58] sm:$0xff]
          %v209 = vld [vmem:[%s160 + $0x60] sm:$0xff]
          %v210 = vld [vmem:[%s160 + $0x68] sm:$0xff]
          %v211 = vld [vmem:[%s160 + $0x70] sm:$0xff]
          %v212 = vld [vmem:[%s160 + $0x78] sm:$0xff]
          %vm213 = vcmask 523264
          %v214 = vsel %vm213, %v197, -inf
          %v215 = vsel %vm213, %v198, -inf
          %v216 = vmax.f32 %v214, %v215
          %v217 = vrot.slane %v216, 4
          %v218 = vmax.f32 %v216, %v217
          %v219 = vrot.slane %v218, 2
          %v220 = vmax.f32 %v218, %v219
          %v221 = vrot.slane %v220, 1
          %v222 = vmax.f32 %v220, %v221
          %v223 = vsel %vm213, %v199, -inf
          %v224 = vsel %vm213, %v200, -inf
          %v225 = vmax.f32 %v223, %v224
          %v226 = vrot.slane %v225, 4
          %v227 = vmax.f32 %v225, %v226
          %v228 = vrot.slane %v227, 2
          %v229 = vmax.f32 %v227, %v228
          %v230 = vrot.slane %v229, 1
          %v231 = vmax.f32 %v229, %v230
          %v232 = vsel %vm213, %v201, -inf
          %v233 = vsel %vm213, %v202, -inf
          %v234 = vmax.f32 %v232, %v233
          %v235 = vrot.slane %v234, 4
          %v236 = vmax.f32 %v234, %v235
          %v237 = vrot.slane %v236, 2
          %v238 = vmax.f32 %v236, %v237
          %v239 = vrot.slane %v238, 1
          %v240 = vmax.f32 %v238, %v239
          %v241 = vsel %vm213, %v203, -inf
          %v242 = vsel %vm213, %v204, -inf
          %v243 = vmax.f32 %v241, %v242
          %v244 = vrot.slane %v243, 4
          %v245 = vmax.f32 %v243, %v244
          %v246 = vrot.slane %v245, 2
          %v247 = vmax.f32 %v245, %v246
          %v248 = vrot.slane %v247, 1
          %v249 = vmax.f32 %v247, %v248
          %v250 = vsel %vm213, %v205, -inf
          %v251 = vsel %vm213, %v206, -inf
          %v252 = vmax.f32 %v250, %v251
          %v253 = vrot.slane %v252, 4
          %v254 = vmax.f32 %v252, %v253
          %v255 = vrot.slane %v254, 2
          %v256 = vmax.f32 %v254, %v255
          %v257 = vrot.slane %v256, 1
          %v258 = vmax.f32 %v256, %v257
          %v259 = vsel %vm213, %v207, -inf
          %v260 = vsel %vm213, %v208, -inf
          %v261 = vmax.f32 %v259, %v260
          %v262 = vrot.slane %v261, 4
          %v263 = vmax.f32 %v261, %v262
          %v264 = vrot.slane %v263, 2
          %v265 = vmax.f32 %v263, %v264
          %v266 = vrot.slane %v265, 1
          %v267 = vmax.f32 %v265, %v266
          %v268 = vsel %vm213, %v209, -inf
          %v269 = vsel %vm213, %v210, -inf
          %v270 = vmax.f32 %v268, %v269
          %v271 = vrot.slane %v270, 4
          %v272 = vmax.f32 %v270, %v271
          %v273 = vrot.slane %v272, 2
          %v274 = vmax.f32 %v272, %v273
          %v275 = vrot.slane %v274, 1
          %v276 = vmax.f32 %v274, %v275
          %v277 = vsel %vm213, %v211, -inf
          %v278 = vsel %vm213, %v212, -inf
          %v279 = vmax.f32 %v277, %v278
          %v280 = vrot.slane %v279, 4
          %v281 = vmax.f32 %v279, %v280
          %v282 = vrot.slane %v281, 2
          %v283 = vmax.f32 %v281, %v282
          %v284 = vrot.slane %v283, 1
          %v285 = vmax.f32 %v283, %v284
          // Predicated region
          $region33: #{tpu_custom_call.1} parent=31 // pred_check
            %p286 = pneg %p189
          $region34: #{tpu_custom_call.1} parent=31 // pred_check_branch
            %288 = sbr.rel (%p286) target = $region36
          $region35: #{tpu_custom_call.1} parent=31 // pred_region
            %vm297 = vcmask 1041409
            %v298 = vsel %vm297, %v231, %v222
            %vm299 = vcmask 1042434
            %v300 = vsel %vm299, %v240, %v298
            %vm301 = vcmask 1043459
            %v302 = vsel %vm301, %v249, %v300
            %vm303 = vcmask 1044484
            %v304 = vsel %vm303, %v258, %v302
            %vm305 = vcmask 1045509
            %v306 = vsel %vm305, %v267, %v304
            %vm307 = vcmask 1046534
            %v308 = vsel %vm307, %v276, %v306
            %vm309 = vcmask 1047559
            %v310 = vsel %vm309, %v285, %v308
            %312 = vst.msk [vmem:[%s178] sm:$0xff] %vm213, %v310
          $region36: #{tpu_custom_call.1} parent=31 // pred_fallthru
            _
          %p313 = scmp.gt.s32.totalorder %s188, %s185
          // Predicated region
          $region37: #{tpu_custom_call.1} parent=31 // pred_check
            %p314 = pneg %p313
          $region38: #{tpu_custom_call.1} parent=31 // pred_check_branch
            %316 = sbr.rel (%p314) target = $region40
          $region39: #{tpu_custom_call.1} parent=31 // pred_region
            %v317 = vld [vmem:[%s178] sm:$0xff]
            %vm326 = vcmask 1041409
            %v327 = vsel %vm326, %v231, %v222
            %vm328 = vcmask 1042434
            %v329 = vsel %vm328, %v240, %v327
            %vm330 = vcmask 1043459
            %v331 = vsel %vm330, %v249, %v329
            %vm332 = vcmask 1044484
            %v333 = vsel %vm332, %v258, %v331
            %vm334 = vcmask 1045509
            %v335 = vsel %vm334, %v267, %v333
            %vm336 = vcmask 1046534
            %v337 = vsel %vm336, %v276, %v335
            %vm338 = vcmask 1047559
            %v339 = vsel %vm338, %v285, %v337
            %v341 = vmax.f32 %v317, %v339
            %342 = vst.msk [vmem:[%s178] sm:$0xff] %vm213, %v341
          $region40: #{tpu_custom_call.1} parent=31 // pred_fallthru
            _
        $region32: #{tpu_custom_call.1} parent=23 // pred_fallthru
          _
        %p343 = pneg %p194
        // Predicated region
        $region41: #{tpu_custom_call.1} parent=23 // pred_check
          _
        $region42: #{tpu_custom_call.1} parent=23 // pred_check_branch
          %345 = sbr.rel (%p194) target = $region44
        $region43: #{tpu_custom_call.1} parent=23 // pred_region
          %v346 = vld [vmem:[%s160] sm:$0xff]
          %v347 = vld [vmem:[%s160 + $0x8] sm:$0xff]
          %v348 = vld [vmem:[%s160 + $0x10] sm:$0xff]
          %v349 = vld [vmem:[%s160 + $0x18] sm:$0xff]
          %v350 = vld [vmem:[%s160 + $0x20] sm:$0xff]
          %v351 = vld [vmem:[%s160 + $0x28] sm:$0xff]
          %v352 = vld [vmem:[%s160 + $0x30] sm:$0xff]
          %v353 = vld [vmem:[%s160 + $0x38] sm:$0xff]
          %v354 = vld [vmem:[%s160 + $0x40] sm:$0xff]
          %v355 = vld [vmem:[%s160 + $0x48] sm:$0xff]
          %v356 = vld [vmem:[%s160 + $0x50] sm:$0xff]
          %v357 = vld [vmem:[%s160 + $0x58] sm:$0xff]
          %v358 = vld [vmem:[%s160 + $0x60] sm:$0xff]
          %v359 = vld [vmem:[%s160 + $0x68] sm:$0xff]
          %v360 = vld [vmem:[%s160 + $0x70] sm:$0xff]
          %v361 = vld [vmem:[%s160 + $0x78] sm:$0xff]
          %v362 = vlaneseq
          %v363 = vshrl.u32 %v362, 7
          %v364 = vadd.s32 %v363, 8
          %v365 = vstv %s188
          %v366 = vadd.s32 %v365, %v363
          %v367 = vadd.s32 %v365, %v364
          %v368 = vstv %s185
          %vm369 = vcmp.ge.s32.totalorder %v366, %v368
          %vm370 = vcmp.ge.s32.totalorder %v367, %v368
          %v371 = vstv %s187
          %vm372 = vcmp.lt.s32.totalorder %v366, %v371
          %vm373 = vcmp.lt.s32.totalorder %v367, %v371
          %vm374 = vmand %vm369, %vm372
          %vm375 = vmand %vm370, %vm373
          %v376 = vsel %vm374, 1, 0
          %v377 = vsel %vm375, 1, 0
          %vm378 = vcmp.eq.s32.totalorder %v376, 1
          %vm379 = vcmp.eq.s32.totalorder %v377, 1
          %v380 = vsel %vm378, %v346, -inf
          %v381 = vsel %vm379, %v347, -inf
          %v382 = vsel %vm378, %v348, -inf
          %v383 = vsel %vm379, %v349, -inf
          %v384 = vsel %vm378, %v350, -inf
          %v385 = vsel %vm379, %v351, -inf
          %v386 = vsel %vm378, %v352, -inf
          %v387 = vsel %vm379, %v353, -inf
          %v388 = vsel %vm378, %v354, -inf
          %v389 = vsel %vm379, %v355, -inf
          %v390 = vsel %vm378, %v356, -inf
          %v391 = vsel %vm379, %v357, -inf
          %v392 = vsel %vm378, %v358, -inf
          %v393 = vsel %vm379, %v359, -inf
          %v394 = vsel %vm378, %v360, -inf
          %v395 = vsel %vm379, %v361, -inf
          %vm396 = vcmask 523264
          %v397 = vsel %vm396, %v380, -inf
          %v398 = vsel %vm396, %v381, -inf
          %v399 = vmax.f32 %v397, %v398
          %v400 = vrot.slane %v399, 4
          %v401 = vmax.f32 %v399, %v400
          %v402 = vrot.slane %v401, 2
          %v403 = vmax.f32 %v401, %v402
          %v404 = vrot.slane %v403, 1
          %v405 = vmax.f32 %v403, %v404
          %v406 = vsel %vm396, %v382, -inf
          %v407 = vsel %vm396, %v383, -inf
          %v408 = vmax.f32 %v406, %v407
          %v409 = vrot.slane %v408, 4
          %v410 = vmax.f32 %v408, %v409
          %v411 = vrot.slane %v410, 2
          %v412 = vmax.f32 %v410, %v411
          %v413 = vrot.slane %v412, 1
          %v414 = vmax.f32 %v412, %v413
          %v415 = vsel %vm396, %v384, -inf
          %v416 = vsel %vm396, %v385, -inf
          %v417 = vmax.f32 %v415, %v416
          %v418 = vrot.slane %v417, 4
          %v419 = vmax.f32 %v417, %v418
          %v420 = vrot.slane %v419, 2
          %v421 = vmax.f32 %v419, %v420
          %v422 = vrot.slane %v421, 1
          %v423 = vmax.f32 %v421, %v422
          %v424 = vsel %vm396, %v386, -inf
          %v425 = vsel %vm396, %v387, -inf
          %v426 = vmax.f32 %v424, %v425
          %v427 = vrot.slane %v426, 4
          %v428 = vmax.f32 %v426, %v427
          %v429 = vrot.slane %v428, 2
          %v430 = vmax.f32 %v428, %v429
          %v431 = vrot.slane %v430, 1
          %v432 = vmax.f32 %v430, %v431
          %v433 = vsel %vm396, %v388, -inf
          %v434 = vsel %vm396, %v389, -inf
          %v435 = vmax.f32 %v433, %v434
          %v436 = vrot.slane %v435, 4
          %v437 = vmax.f32 %v435, %v436
          %v438 = vrot.slane %v437, 2
          %v439 = vmax.f32 %v437, %v438
          %v440 = vrot.slane %v439, 1
          %v441 = vmax.f32 %v439, %v440
          %v442 = vsel %vm396, %v390, -inf
          %v443 = vsel %vm396, %v391, -inf
          %v444 = vmax.f32 %v442, %v443
          %v445 = vrot.slane %v444, 4
          %v446 = vmax.f32 %v444, %v445
          %v447 = vrot.slane %v446, 2
          %v448 = vmax.f32 %v446, %v447
          %v449 = vrot.slane %v448, 1
          %v450 = vmax.f32 %v448, %v449
          %v451 = vsel %vm396, %v392, -inf
          %v452 = vsel %vm396, %v393, -inf
          %v453 = vmax.f32 %v451, %v452
          %v454 = vrot.slane %v453, 4
          %v455 = vmax.f32 %v453, %v454
          %v456 = vrot.slane %v455, 2
          %v457 = vmax.f32 %v455, %v456
          %v458 = vrot.slane %v457, 1
          %v459 = vmax.f32 %v457, %v458
          %v460 = vsel %vm396, %v394, -inf
          %v461 = vsel %vm396, %v395, -inf
          %v462 = vmax.f32 %v460, %v461
          %v463 = vrot.slane %v462, 4
          %v464 = vmax.f32 %v462, %v463
          %v465 = vrot.slane %v464, 2
          %v466 = vmax.f32 %v464, %v465
          %v467 = vrot.slane %v466, 1
          %v468 = vmax.f32 %v466, %v467
          // Predicated region
          $region45: #{tpu_custom_call.1} parent=43 // pred_check
            %p469 = pneg %p189
          $region46: #{tpu_custom_call.1} parent=43 // pred_check_branch
            %471 = sbr.rel (%p469) target = $region48
          $region47: #{tpu_custom_call.1} parent=43 // pred_region
            %vm480 = vcmask 1041409
            %v481 = vsel %vm480, %v414, %v405
            %vm482 = vcmask 1042434
            %v483 = vsel %vm482, %v423, %v481
            %vm484 = vcmask 1043459
            %v485 = vsel %vm484, %v432, %v483
            %vm486 = vcmask 1044484
            %v487 = vsel %vm486, %v441, %v485
            %vm488 = vcmask 1045509
            %v489 = vsel %vm488, %v450, %v487
            %vm490 = vcmask 1046534
            %v491 = vsel %vm490, %v459, %v489
            %vm492 = vcmask 1047559
            %v493 = vsel %vm492, %v468, %v491
            %495 = vst.msk [vmem:[%s178] sm:$0xff] %vm396, %v493
          $region48: #{tpu_custom_call.1} parent=43 // pred_fallthru
            _
          %p496 = scmp.gt.s32.totalorder %s188, %s185
          // Predicated region
          $region49: #{tpu_custom_call.1} parent=43 // pred_check
            %p497 = pneg %p496
          $region50: #{tpu_custom_call.1} parent=43 // pred_check_branch
            %499 = sbr.rel (%p497) target = $region52
          $region51: #{tpu_custom_call.1} parent=43 // pred_region
            %v500 = vld [vmem:[%s178] sm:$0xff]
            %vm509 = vcmask 1041409
            %v510 = vsel %vm509, %v414, %v405
            %vm511 = vcmask 1042434
            %v512 = vsel %vm511, %v423, %v510
            %vm513 = vcmask 1043459
            %v514 = vsel %vm513, %v432, %v512
            %vm515 = vcmask 1044484
            %v516 = vsel %vm515, %v441, %v514
            %vm517 = vcmask 1045509
            %v518 = vsel %vm517, %v450, %v516
            %vm519 = vcmask 1046534
            %v520 = vsel %vm519, %v459, %v518
            %vm521 = vcmask 1047559
            %v522 = vsel %vm521, %v468, %v520
            %v524 = vmax.f32 %v500, %v522
            %525 = vst.msk [vmem:[%s178] sm:$0xff] %vm396, %v524
          $region52: #{tpu_custom_call.1} parent=43 // pred_fallthru
            _
        $region44: #{tpu_custom_call.1} parent=23 // pred_fallthru
          _
        %s526 = sand.u32 %s92, 1
        %s527 = scalar_lea.sflag [#allocation9], %s526
        %s528 = sand.u32 %s92, 1
        %s529 = smul.addr %s528, 8
        %s530 = scalar_lea.vmem [#allocation10], %s529
        // Predicated region
        $region53: #{tpu_custom_call.1} parent=23 // pred_check
          %p531 = pneg %p102
        $region54: #{tpu_custom_call.1} parent=23 // pred_check_branch
          %533 = sbr.rel (%p531) target = $region56
        $region55: #{tpu_custom_call.1} parent=23 // pred_region
          %s534 = sld [smem:[#allocation3 + %s43]]
          %s536 = ssub.s32 128, 128
          %537 = vsyncadd %s527, %s536
          %s538 = sadd.s32 %s42, %s534
          %s539 = smul.addr %s538, 128
          %s540 = scalar_lea.hbm %s5, %s539
          %s542 = sshll.u32 %s530, 4
          %s543 = int_to_ptr.vmem [resolvable:$true] %s542
          %545 = dma.vmem_to_hbm [thread:$0]  %s543, 128, %s540, %s527
        $region56: #{tpu_custom_call.1} parent=23 // pred_fallthru
          _
      $region24: #{tpu_custom_call.1} parent=5 // pred_fallthru
        _
      %p546 = scmp.le.s32.totalorder 2, %s33
      // Predicated region
      $region57: #{tpu_custom_call.1} parent=5 // pred_check
        %p547 = pneg %p546
      $region58: #{tpu_custom_call.1} parent=5 // pred_check_branch
        %549 = sbr.rel (%p547) target = $region60
      $region59: #{tpu_custom_call.1} parent=5 // pred_region
        %s550 = ssub.s32 %s33, 2
        // Predicated region
        $region61: #{tpu_custom_call.1} parent=59 // pred_check
          %p551 = pneg %p108
        $region62: #{tpu_custom_call.1} parent=59 // pred_check_branch
          %553 = sbr.rel (%p551) target = $region64
        $region63: #{tpu_custom_call.1} parent=59 // pred_region
          %s554 = sand.u32 %s93, 1
          %s555 = scalar_lea.sflag [#allocation9], %s554
          %s556 = sand.u32 %s93, 1
          %s557 = smul.addr %s556, 8
          %s558 = scalar_lea.vmem [#allocation10], %s557
          %559 = dma.done %s555, 128
        $region64: #{tpu_custom_call.1} parent=59 // pred_fallthru
          _
      $region60: #{tpu_custom_call.1} parent=5 // pred_fallthru
        _
    $region6: #{tpu_custom_call.1} parent=1 // loop_footer
      %s37 = sadd.s32 1, %s33
    $region7: #{tpu_custom_call.1} parent=1 // loop_footer_branch
      %32 = sbr.rel target = $region3
    $region8: #{tpu_custom_call.1} parent=1 // loop_exit
      _
    %560 = vsyncpa [#allocation8], 1
    %s561 = scalar_lea.sflag [#allocation8], 1
    %562 = vsyncpa %s561, 1
    %563 = vsyncpa [#allocation9], 1
    %s564 = scalar_lea.sflag [#allocation9], 1
    %565 = vsyncpa %s564, 1

</llo_original>
